<compile_context>
chip_gen: v7x
topology: tpu7x:2x2x1
jax: 0.10.0
libtpu: 0.0.40
codegen_flags: <defaults>
</compile_context>

<pallas_src>
import functools

import jax
import jax.numpy as jnp
import numpy as np
from jax.experimental import pallas as pl
from jax.experimental.pallas import tpu as pltpu


# ----------------------------------------------------------------------------
# Pallas kernel: residual MLP (LinearModel) + Mobius flow vector math
# ----------------------------------------------------------------------------
def _mobius_kernel(x_ref, c1_ref, c2_ref,
                   w1_ref, b1_ref, w2_ref, b2_ref,
                   w3_ref, b3_ref, w4_ref, b4_ref,
                   out_ref):
    wdt = w1_ref.dtype            # weights may be bf16; cast activations at MXU
    x = x_ref[...]                # [TB, Ni], f32

    # --- LinearModel: x = l1(x); x += relu(l2(x)); x += relu(l3(x)); relu(l4(x))
    h = jnp.dot(x.astype(wdt), w1_ref[...],
                preferred_element_type=jnp.float32) + b1_ref[...]
    h = h + jnp.maximum(
        jnp.dot(h.astype(wdt), w2_ref[...],
                preferred_element_type=jnp.float32) + b2_ref[...], 0.0)
    h = h + jnp.maximum(
        jnp.dot(h.astype(wdt), w3_ref[...],
                preferred_element_type=jnp.float32) + b3_ref[...], 0.0)
    out = jnp.maximum(
        jnp.dot(h.astype(wdt), w4_ref[...],
                preferred_element_type=jnp.float32) + b4_ref[...], 0.0)
    # out: [TB, Nop] (lane-padded with zero columns); only first 4 cols are real.

    weight = jax.nn.sigmoid(out[:, 0:1])                          # [TB, 1]
    w_ = out[:, 1:4]                                              # [TB, 3]
    c1 = c1_ref[...]                                              # [TB, 3]
    c2 = c2_ref[...]                                              # [TB, 3]

    # project w_ onto the orthogonal complement of c1, rescale.
    w = w_ - c1 * jnp.sum(c1 * w_, axis=1, keepdims=True)
    w_norm = jnp.sqrt(jnp.sum(w * w, axis=1, keepdims=True))
    # exact reciprocal keeps parity with the f32 reference; pl.reciprocal(...,
    # approx=True) would push this onto the EUP if the VPU ever becomes hot.
    w = (0.7 * pl.reciprocal(1e-8 + w_norm)) * w * weight

    c2_w = c2 - w
    c2_w_sq = jnp.sum(c2_w * c2_w, axis=1, keepdims=True)         # ||c2 - w||^2
    w_sq = jnp.sum(w * w, axis=1, keepdims=True)                  # ||w||^2
    constant = (1.0 - w_sq) * pl.reciprocal(c2_w_sq)
    c2_new = constant * c2_w - w                                  # [TB, 3]

    # c3_new = cross(c1, c2_new); emit everything with ONE store:
    #   out block layout: [ c2_new (3) | c3_new (3) | pad (2) ]
    a0, a1, a2 = c1[:, 0:1], c1[:, 1:2], c1[:, 2:3]
    d0, d1, d2 = c2_new[:, 0:1], c2_new[:, 1:2], c2_new[:, 2:3]
    out_ref[...] = jnp.concatenate(
        [c2_new,
         a1 * d2 - a2 * d1,
         a2 * d0 - a0 * d2,
         a0 * d1 - a1 * d0,
         jnp.zeros((c2_new.shape[0], 2), jnp.float32)],
        axis=1)


def _mobius_net_pallas(x, c1, c2, params):
    """Runs the MLP + Mobius math kernel. x: [B, Ni], c1/c2: [B, 3]."""
    w1, b1, w2, b2, w3, b3, w4, b4 = params
    B, Ni = x.shape
    Nh = w1.shape[1]
    Nop = w4.shape[1]          # lane-padded output width of the last layer

    # Batch tiling: 128-row tiles fill the MXU and amortize per-step overhead;
    # small batches are rounded up to a multiple of 8 (sublane) and zero-padded.
    TB = min(128, ((B + 7) // 8) * 8)
    B_pad = ((B + TB - 1) // TB) * TB
    if B_pad != B:
        pad = B_pad - B
        x = jnp.pad(x, ((0, pad), (0, 0)))
        c1 = jnp.pad(c1, ((0, pad), (0, 0)))
        c2 = jnp.pad(c2, ((0, pad), (0, 0)))

    # Weight blocks keep a constant block index -> Pallas keeps them resident
    # across grid steps (no re-DMA).  For very large Nh on v7x (64 MiB VMEM),
    # add pipeline_mode=pl.Buffered(1) on these constant specs.
    const_spec = lambda shape: pl.BlockSpec(shape, lambda i: (0, 0))
    batch_spec = lambda shape: pl.BlockSpec(shape, lambda i: (i, 0))

    out8 = pl.pallas_call(
        _mobius_kernel,
        grid=(B_pad // TB,),
        in_specs=[
            batch_spec((TB, Ni)),
            batch_spec((TB, 3)),
            batch_spec((TB, 3)),
            const_spec((Ni, Nh)), const_spec((1, Nh)),
            const_spec((Nh, Nh)), const_spec((1, Nh)),
            const_spec((Nh, Nh)), const_spec((1, Nh)),
            const_spec((Nh, Nop)), const_spec((1, Nop)),
        ],
        out_specs=batch_spec((TB, 8)),
        out_shape=jax.ShapeDtypeStruct((B_pad, 8), jnp.float32),
        compiler_params=pltpu.CompilerParams(
            dimension_semantics=("parallel",)),
    )(x, c1, c2, w1, b1, w2, b2, w3, b3, w4, b4)

    return out8[:B, 0:3], out8[:B, 3:6]


@functools.partial(jax.jit, static_argnames=("xyz_index",))
def mobius_flow_forward(R, t, C, params, xyz_index):
    """MobiusFlow.forward: returns (R_new, t)."""
    c1 = R[:, :, xyz_index]                   # [B, 3]
    c2 = R[:, :, (xyz_index + 1) % 3]         # [B, 3]
    x = jnp.concatenate([C, t], axis=1)       # [B, n_shape + 3]

    c2_new, c3_new = _mobius_net_pallas(x, c1, c2, params)

    # glue: re-assemble R_new columns (torch writes columns xyz_index, +1, +2)
    cols = [None, None, None]
    cols[xyz_index] = c1
    cols[(xyz_index + 1) % 3] = c2_new
    cols[(xyz_index + 2) % 3] = c3_new
    R_new = jnp.stack(cols, axis=-1)          # [B, 3, 3]
    return R_new, t


# ----------------------------------------------------------------------------
# Pure-JAX reference (mirrors the PyTorch math and the bf16 weight precision)
# ----------------------------------------------------------------------------
def mobius_flow_reference(R, t, C, params, xyz_index):
    w1, b1, w2, b2, w3, b3, w4, b4 = params

    def mm(a, w):   # same bf16-weight / f32-accumulate path as the kernel
        return jnp.dot(a.astype(w.dtype), w, preferred_element_type=jnp.float32)

    c1 = R[:, :, xyz_index]
    c2 = R[:, :, (xyz_index + 1) % 3]
    x = jnp.concatenate([C, t], axis=1)

    h = mm(x, w1) + b1[0]
    h = h + jax.nn.relu(mm(h, w2) + b2[0])
    h = h + jax.nn.relu(mm(h, w3) + b3[0])
    out = jax.nn.relu(mm(h, w4) + b4[0])

    weight = jax.nn.sigmoid(out[:, :1])
    w_ = out[:, 1:4]
    w = w_ - c1 * jnp.sum(c1 * w_, axis=1, keepdims=True)
    w = 0.7 / (1e-8 + jnp.linalg.norm(w, axis=-1, keepdims=True)) * w * weight
    c2_w = c2 - w
    c2_w_l = jnp.linalg.norm(c2_w, axis=1, keepdims=True)
    constant = (1 - jnp.linalg.norm(w, axis=1, keepdims=True) ** 2) / c2_w_l ** 2
    c2_new = constant * c2_w - w
    c3_new = jnp.cross(c1, c2_new)

    cols = [None, None, None]
    cols[xyz_index] = c1
    cols[(xyz_index + 1) % 3] = c2_new
    cols[(xyz_index + 2) % 3] = c3_new
    return jnp.stack(cols, axis=-1), t


# ----------------------------------------------------------------------------
# Parameter init (torch.nn.Linear-style uniform) + kernel-friendly packing
# ----------------------------------------------------------------------------
def init_linear_model_params(key, Ni, No, Nh):
    def linear(k, fan_in, fan_out):
        kw, kb = jax.random.split(k)
        bound = 1.0 / np.sqrt(fan_in)
        w = jax.random.uniform(kw, (fan_in, fan_out), jnp.float32, -bound, bound)
        b = jax.random.uniform(kb, (1, fan_out), jnp.float32, -bound, bound)
        return w, b

    k1, k2, k3, k4 = jax.random.split(key, 4)
    w1, b1 = linear(k1, Ni, Nh)
    w2, b2 = linear(k2, Nh, Nh)
    w3, b3 = linear(k3, Nh, Nh)
    w4, b4 = linear(k4, Nh, No)
    return (w1, b1, w2, b2, w3, b3, w4, b4)


def prepare_params(params, weights_dtype=jnp.bfloat16, lane_pad=128):
    """Cast weights to bf16 (halves weight DMA) and zero-pad the last layer to
    a lane-aligned width.  Biases stay f32 (added after f32 accumulation)."""
    w1, b1, w2, b2, w3, b3, w4, b4 = params
    pad = (-w4.shape[1]) % lane_pad
    if pad:
        w4 = jnp.pad(w4, ((0, 0), (0, pad)))
        b4 = jnp.pad(b4, ((0, 0), (0, pad)))
    cast = lambda w: w.astype(weights_dtype)
    return (cast(w1), b1, cast(w2), b2, cast(w3), b3, cast(w4), b4)


if __name__ == "__main__":
    B = 8            # batch
    n_shape = 29     # shape-code dimension  -> MLP input Ni = n_shape + 3 = 32
    Nh = 256
    xyz_index = 1

    key = jax.random.PRNGKey(0)
    k_params, k_R, k_t, k_C = jax.random.split(key, 4)

    raw_params = init_linear_model_params(k_params, n_shape + 3, 3 + 1, Nh)
    params = prepare_params(raw_params)      # bf16 weights, lane-padded layer 4

    R = jax.random.normal(k_R, (B, 3, 3), jnp.float32)
    t = jax.random.normal(k_t, (B, 3), jnp.float32)
    C = jax.random.normal(k_C, (B, n_shape), jnp.float32)

    R_new, t_out = mobius_flow_forward(R, t, C, params, xyz_index)
    R_new = jax.block_until_ready(R_new)

    R_ref, t_ref = mobius_flow_reference(R, t, C, params, xyz_index)
    np.testing.assert_allclose(np.asarray(R_new), np.asarray(R_ref),
                               rtol=1e-3, atol=1e-3)
    np.testing.assert_allclose(np.asarray(t_out), np.asarray(t_ref),
                               rtol=1e-6, atol=1e-6)

    print("KERNEL_OK")
</pallas_src>

<mosaic_0001>
module attributes {stable_mosaic.version = 11 : i64} {
  func.func @_mobius_kernel(%arg0: i32, %arg1: memref<8x32xf32, #tpu.memory_space<vmem>>, %arg2: memref<8x3xf32, #tpu.memory_space<vmem>>, %arg3: memref<8x3xf32, #tpu.memory_space<vmem>>, %arg4: memref<32x256xbf16, #tpu.memory_space<vmem>>, %arg5: memref<1x256xf32, #tpu.memory_space<vmem>>, %arg6: memref<256x256xbf16, #tpu.memory_space<vmem>>, %arg7: memref<1x256xf32, #tpu.memory_space<vmem>>, %arg8: memref<256x256xbf16, #tpu.memory_space<vmem>>, %arg9: memref<1x256xf32, #tpu.memory_space<vmem>>, %arg10: memref<256x128xbf16, #tpu.memory_space<vmem>>, %arg11: memref<1x128xf32, #tpu.memory_space<vmem>>, %arg12: memref<8x8xf32, #tpu.memory_space<vmem>>) attributes {dimension_semantics = [#tpu.dimension_semantics<parallel>], iteration_bounds = array<i64: 1>, scalar_prefetch = 0 : i64, scratch_operands = 0 : i64, tpu.core_type = #tpu.core_type<tc>, window_params = [{transform_indices = @transform_0, window_bounds = array<i64: 8, 32>}, {transform_indices = @transform_1, window_bounds = array<i64: 8, 3>}, {transform_indices = @transform_2, window_bounds = array<i64: 8, 3>}, {pipeline_mode = #tpu.pipeline_mode<synchronous>, transform_indices = @transform_3, window_bounds = array<i64: 32, 256>}, {pipeline_mode = #tpu.pipeline_mode<synchronous>, transform_indices = @transform_4, window_bounds = array<i64: 1, 256>}, {pipeline_mode = #tpu.pipeline_mode<synchronous>, transform_indices = @transform_5, window_bounds = array<i64: 256, 256>}, {pipeline_mode = #tpu.pipeline_mode<synchronous>, transform_indices = @transform_6, window_bounds = array<i64: 1, 256>}, {pipeline_mode = #tpu.pipeline_mode<synchronous>, transform_indices = @transform_7, window_bounds = array<i64: 256, 256>}, {pipeline_mode = #tpu.pipeline_mode<synchronous>, transform_indices = @transform_8, window_bounds = array<i64: 1, 256>}, {pipeline_mode = #tpu.pipeline_mode<synchronous>, transform_indices = @transform_9, window_bounds = array<i64: 256, 128>}, {pipeline_mode = #tpu.pipeline_mode<synchronous>, transform_indices = @transform_10, window_bounds = array<i64: 1, 128>}, {transform_indices = @transform_11, window_bounds = array<i64: 8, 8>}]} {
    %c0 = arith.constant 0 : index
    %c0_0 = arith.constant 0 : index
    %0 = vector.load %arg1[%c0, %c0_0] : memref<8x32xf32, #tpu.memory_space<vmem>>, vector<8x32xf32>
    %1 = arith.truncf %0 : vector<8x32xf32> to vector<8x32xbf16>
    %c0_1 = arith.constant 0 : index
    %c0_2 = arith.constant 0 : index
    %2 = vector.load %arg4[%c0_1, %c0_2] : memref<32x256xbf16, #tpu.memory_space<vmem>>, vector<32x256xbf16>
    %cst = arith.constant dense<0.000000e+00> : vector<8x256xf32>
    %3 = tpu.matmul %1, %2, %cst {dimension_numbers = #tpu.dot_dimension_numbers<[1], [0], [0], [1], [0, 0, 1, 1], [], []>} : vector<8x32xbf16>, vector<32x256xbf16>, vector<8x256xf32> -> vector<8x256xf32>
    %c0_3 = arith.constant 0 : index
    %c0_4 = arith.constant 0 : index
    %4 = vector.load %arg5[%c0_3, %c0_4] : memref<1x256xf32, #tpu.memory_space<vmem>>, vector<1x256xf32>
    %5 = vector.broadcast %4 : vector<1x256xf32> to vector<8x256xf32>
    %6 = arith.addf %3, %5 : vector<8x256xf32>
    %7 = arith.truncf %6 : vector<8x256xf32> to vector<8x256xbf16>
    %c0_5 = arith.constant 0 : index
    %c0_6 = arith.constant 0 : index
    %8 = vector.load %arg6[%c0_5, %c0_6] : memref<256x256xbf16, #tpu.memory_space<vmem>>, vector<256x256xbf16>
    %cst_7 = arith.constant dense<0.000000e+00> : vector<8x256xf32>
    %9 = tpu.matmul %7, %8, %cst_7 {dimension_numbers = #tpu.dot_dimension_numbers<[1], [0], [0], [1], [0, 0, 1, 1], [], []>} : vector<8x256xbf16>, vector<256x256xbf16>, vector<8x256xf32> -> vector<8x256xf32>
    %c0_8 = arith.constant 0 : index
    %c0_9 = arith.constant 0 : index
    %10 = vector.load %arg7[%c0_8, %c0_9] : memref<1x256xf32, #tpu.memory_space<vmem>>, vector<1x256xf32>
    %11 = vector.broadcast %10 : vector<1x256xf32> to vector<8x256xf32>
    %12 = arith.addf %9, %11 : vector<8x256xf32>
    %cst_10 = arith.constant 0.000000e+00 : f32
    %13 = vector.broadcast %cst_10 : f32 to vector<8x256xf32>
    %14 = arith.maximumf %12, %13 : vector<8x256xf32>
    %15 = arith.addf %6, %14 : vector<8x256xf32>
    %16 = arith.truncf %15 : vector<8x256xf32> to vector<8x256xbf16>
    %c0_11 = arith.constant 0 : index
    %c0_12 = arith.constant 0 : index
    %17 = vector.load %arg8[%c0_11, %c0_12] : memref<256x256xbf16, #tpu.memory_space<vmem>>, vector<256x256xbf16>
    %cst_13 = arith.constant dense<0.000000e+00> : vector<8x256xf32>
    %18 = tpu.matmul %16, %17, %cst_13 {dimension_numbers = #tpu.dot_dimension_numbers<[1], [0], [0], [1], [0, 0, 1, 1], [], []>} : vector<8x256xbf16>, vector<256x256xbf16>, vector<8x256xf32> -> vector<8x256xf32>
    %c0_14 = arith.constant 0 : index
    %c0_15 = arith.constant 0 : index
    %19 = vector.load %arg9[%c0_14, %c0_15] : memref<1x256xf32, #tpu.memory_space<vmem>>, vector<1x256xf32>
    %20 = vector.broadcast %19 : vector<1x256xf32> to vector<8x256xf32>
    %21 = arith.addf %18, %20 : vector<8x256xf32>
    %cst_16 = arith.constant 0.000000e+00 : f32
    %22 = vector.broadcast %cst_16 : f32 to vector<8x256xf32>
    %23 = arith.maximumf %21, %22 : vector<8x256xf32>
    %24 = arith.addf %15, %23 : vector<8x256xf32>
    %25 = arith.truncf %24 : vector<8x256xf32> to vector<8x256xbf16>
    %c0_17 = arith.constant 0 : index
    %c0_18 = arith.constant 0 : index
    %26 = vector.load %arg10[%c0_17, %c0_18] : memref<256x128xbf16, #tpu.memory_space<vmem>>, vector<256x128xbf16>
    %cst_19 = arith.constant dense<0.000000e+00> : vector<8x128xf32>
    %27 = tpu.matmul %25, %26, %cst_19 {dimension_numbers = #tpu.dot_dimension_numbers<[1], [0], [0], [1], [0, 0, 1, 1], [], []>} : vector<8x256xbf16>, vector<256x128xbf16>, vector<8x128xf32> -> vector<8x128xf32>
    %c0_20 = arith.constant 0 : index
    %c0_21 = arith.constant 0 : index
    %28 = vector.load %arg11[%c0_20, %c0_21] : memref<1x128xf32, #tpu.memory_space<vmem>>, vector<1x128xf32>
    %29 = vector.broadcast %28 : vector<1x128xf32> to vector<8x128xf32>
    %30 = arith.addf %27, %29 : vector<8x128xf32>
    %cst_22 = arith.constant 0.000000e+00 : f32
    %31 = vector.broadcast %cst_22 : f32 to vector<8x128xf32>
    %32 = arith.maximumf %30, %31 : vector<8x128xf32>
    %33 = vector.extract_strided_slice %32 {offsets = [0, 0], sizes = [8, 1], strides = [1, 1]} : vector<8x128xf32> to vector<8x1xf32>
    %34 = arith.negf %33 : vector<8x1xf32>
    %35 = math.exp %34 : vector<8x1xf32>
    %cst_23 = arith.constant 1.000000e+00 : f32
    %36 = vector.broadcast %cst_23 : f32 to vector<8x1xf32>
    %37 = arith.addf %36, %35 : vector<8x1xf32>
    %38 = arith.divf %36, %37 : vector<8x1xf32>
    %39 = vector.extract_strided_slice %32 {offsets = [0, 1], sizes = [8, 3], strides = [1, 1]} : vector<8x128xf32> to vector<8x3xf32>
    %c0_24 = arith.constant 0 : index
    %c0_25 = arith.constant 0 : index
    %40 = vector.load %arg2[%c0_24, %c0_25] : memref<8x3xf32, #tpu.memory_space<vmem>>, vector<8x3xf32>
    %c0_26 = arith.constant 0 : index
    %c0_27 = arith.constant 0 : index
    %41 = vector.load %arg3[%c0_26, %c0_27] : memref<8x3xf32, #tpu.memory_space<vmem>>, vector<8x3xf32>
    %42 = arith.mulf %40, %39 : vector<8x3xf32>
    %cst_28 = arith.constant dense<0.000000e+00> : vector<8xf32>
    %43 = vector.multi_reduction <add>, %42, %cst_28 [1] : vector<8x3xf32> to vector<8xf32>
    %44 = vector.shape_cast %43 : vector<8xf32> to vector<8x1xf32>
    %45 = vector.broadcast %44 : vector<8x1xf32> to vector<8x3xf32>
    %46 = arith.mulf %40, %45 : vector<8x3xf32>
    %47 = arith.subf %39, %46 : vector<8x3xf32>
    %48 = arith.mulf %47, %47 : vector<8x3xf32>
    %cst_29 = arith.constant dense<0.000000e+00> : vector<8xf32>
    %49 = vector.multi_reduction <add>, %48, %cst_29 [1] : vector<8x3xf32> to vector<8xf32>
    %50 = vector.shape_cast %49 : vector<8xf32> to vector<8x1xf32>
    %51 = math.sqrt %50 : vector<8x1xf32>
    %cst_30 = arith.constant 9.99999993E-9 : f32
    %52 = vector.broadcast %cst_30 : f32 to vector<8x1xf32>
    %53 = arith.addf %52, %51 : vector<8x1xf32>
    %54 = tpu.reciprocal %53 : vector<8x1xf32> -> vector<8x1xf32>
    %cst_31 = arith.constant 0.699999988 : f32
    %55 = vector.broadcast %cst_31 : f32 to vector<8x1xf32>
    %56 = arith.mulf %55, %54 : vector<8x1xf32>
    %57 = vector.broadcast %56 : vector<8x1xf32> to vector<8x3xf32>
    %58 = arith.mulf %57, %47 : vector<8x3xf32>
    %59 = vector.broadcast %38 : vector<8x1xf32> to vector<8x3xf32>
    %60 = arith.mulf %58, %59 : vector<8x3xf32>
    %61 = arith.subf %41, %60 : vector<8x3xf32>
    %62 = arith.mulf %61, %61 : vector<8x3xf32>
    %cst_32 = arith.constant dense<0.000000e+00> : vector<8xf32>
    %63 = vector.multi_reduction <add>, %62, %cst_32 [1] : vector<8x3xf32> to vector<8xf32>
    %64 = vector.shape_cast %63 : vector<8xf32> to vector<8x1xf32>
    %65 = arith.mulf %60, %60 : vector<8x3xf32>
    %cst_33 = arith.constant dense<0.000000e+00> : vector<8xf32>
    %66 = vector.multi_reduction <add>, %65, %cst_33 [1] : vector<8x3xf32> to vector<8xf32>
    %67 = vector.shape_cast %66 : vector<8xf32> to vector<8x1xf32>
    %cst_34 = arith.constant 1.000000e+00 : f32
    %68 = vector.broadcast %cst_34 : f32 to vector<8x1xf32>
    %69 = arith.subf %68, %67 : vector<8x1xf32>
    %70 = tpu.reciprocal %64 : vector<8x1xf32> -> vector<8x1xf32>
    %71 = arith.mulf %69, %70 : vector<8x1xf32>
    %72 = vector.broadcast %71 : vector<8x1xf32> to vector<8x3xf32>
    %73 = arith.mulf %72, %61 : vector<8x3xf32>
    %74 = arith.subf %73, %60 : vector<8x3xf32>
    %75 = vector.extract_strided_slice %40 {offsets = [0, 0], sizes = [8, 1], strides = [1, 1]} : vector<8x3xf32> to vector<8x1xf32>
    %76 = vector.extract_strided_slice %40 {offsets = [0, 1], sizes = [8, 1], strides = [1, 1]} : vector<8x3xf32> to vector<8x1xf32>
    %77 = vector.extract_strided_slice %40 {offsets = [0, 2], sizes = [8, 1], strides = [1, 1]} : vector<8x3xf32> to vector<8x1xf32>
    %78 = vector.extract_strided_slice %74 {offsets = [0, 0], sizes = [8, 1], strides = [1, 1]} : vector<8x3xf32> to vector<8x1xf32>
    %79 = vector.extract_strided_slice %74 {offsets = [0, 1], sizes = [8, 1], strides = [1, 1]} : vector<8x3xf32> to vector<8x1xf32>
    %80 = vector.extract_strided_slice %74 {offsets = [0, 2], sizes = [8, 1], strides = [1, 1]} : vector<8x3xf32> to vector<8x1xf32>
    %81 = arith.mulf %76, %80 : vector<8x1xf32>
    %82 = arith.mulf %77, %79 : vector<8x1xf32>
    %83 = arith.subf %81, %82 : vector<8x1xf32>
    %84 = arith.mulf %77, %78 : vector<8x1xf32>
    %85 = arith.mulf %75, %80 : vector<8x1xf32>
    %86 = arith.subf %84, %85 : vector<8x1xf32>
    %87 = arith.mulf %75, %79 : vector<8x1xf32>
    %88 = arith.mulf %76, %78 : vector<8x1xf32>
    %89 = arith.subf %87, %88 : vector<8x1xf32>
    %cst_35 = arith.constant 0.000000e+00 : f32
    %90 = vector.broadcast %cst_35 : f32 to vector<8x2xf32>
    %91 = tpu.concatenate %74, %83, %86, %89, %90 in 1 : vector<8x3xf32>, vector<8x1xf32>, vector<8x1xf32>, vector<8x1xf32>, vector<8x2xf32> -> vector<8x8xf32>
    %c0_36 = arith.constant 0 : index
    %c0_37 = arith.constant 0 : index
    %92 = vector.load %arg12[%c0_36, %c0_37] : memref<8x8xf32, #tpu.memory_space<vmem>>, vector<8x8xf32>
    tpu.vector_store %arg12[%c0_36, %c0_37], %91 {strides = array<i32>} : memref<8x8xf32, #tpu.memory_space<vmem>>, vector<8x8xf32>,
    return
  }
  func.func @transform_0(%arg0: i32) -> (i32, i32) {
    %c0_i32 = arith.constant 0 : i32
    %c0_i32_0 = arith.constant 0 : i32
    return %arg0, %c0_i32 : i32, i32
  }
  func.func @transform_1(%arg0: i32) -> (i32, i32) {
    %c0_i32 = arith.constant 0 : i32
    %c0_i32_0 = arith.constant 0 : i32
    return %arg0, %c0_i32 : i32, i32
  }
  func.func @transform_2(%arg0: i32) -> (i32, i32) {
    %c0_i32 = arith.constant 0 : i32
    %c0_i32_0 = arith.constant 0 : i32
    return %arg0, %c0_i32 : i32, i32
  }
  func.func @transform_3(%arg0: i32) -> (i32, i32) {
    %c0_i32 = arith.constant 0 : i32
    %c0_i32_0 = arith.constant 0 : i32
    %c0_i32_1 = arith.constant 0 : i32
    return %c0_i32, %c0_i32_0 : i32, i32
  }
  func.func @transform_4(%arg0: i32) -> (i32, i32) {
    %c0_i32 = arith.constant 0 : i32
    %c0_i32_0 = arith.constant 0 : i32
    %c0_i32_1 = arith.constant 0 : i32
    return %c0_i32, %c0_i32_0 : i32, i32
  }
  func.func @transform_5(%arg0: i32) -> (i32, i32) {
    %c0_i32 = arith.constant 0 : i32
    %c0_i32_0 = arith.constant 0 : i32
    %c0_i32_1 = arith.constant 0 : i32
    return %c0_i32, %c0_i32_0 : i32, i32
  }
  func.func @transform_6(%arg0: i32) -> (i32, i32) {
    %c0_i32 = arith.constant 0 : i32
    %c0_i32_0 = arith.constant 0 : i32
    %c0_i32_1 = arith.constant 0 : i32
    return %c0_i32, %c0_i32_0 : i32, i32
  }
  func.func @transform_7(%arg0: i32) -> (i32, i32) {
    %c0_i32 = arith.constant 0 : i32
    %c0_i32_0 = arith.constant 0 : i32
    %c0_i32_1 = arith.constant 0 : i32
    return %c0_i32, %c0_i32_0 : i32, i32
  }
  func.func @transform_8(%arg0: i32) -> (i32, i32) {
    %c0_i32 = arith.constant 0 : i32
    %c0_i32_0 = arith.constant 0 : i32
    %c0_i32_1 = arith.constant 0 : i32
    return %c0_i32, %c0_i32_0 : i32, i32
  }
  func.func @transform_9(%arg0: i32) -> (i32, i32) {
    %c0_i32 = arith.constant 0 : i32
    %c0_i32_0 = arith.constant 0 : i32
    %c0_i32_1 = arith.constant 0 : i32
    return %c0_i32, %c0_i32_0 : i32, i32
  }
  func.func @transform_10(%arg0: i32) -> (i32, i32) {
    %c0_i32 = arith.constant 0 : i32
    %c0_i32_0 = arith.constant 0 : i32
    %c0_i32_1 = arith.constant 0 : i32
    return %c0_i32, %c0_i32_0 : i32, i32
  }
  func.func @transform_11(%arg0: i32) -> (i32, i32) {
    %c0_i32 = arith.constant 0 : i32
    %c0_i32_0 = arith.constant 0 : i32
    return %arg0, %c0_i32 : i32, i32
  }
}

</mosaic_0001>

<llo_original>
// kernel: mobius_flow_forward.1
$region0: #{mobius_flow_forward.1}
  #allocation0 [shape = 'u32[]', space=smem, size = 0x4, offset = 0x4, fixed_abs, tag = 'smem constant byte address 0x4 - core index']
  #allocation1 [shape = 'u32[144,128]{1,0:T(1,128)}', space=vmem, size = 0x12000, scoped, tag = 'internal scratch']
  %s0 = inlined_call_operand.vmem [shape: f32[8,32], index: 0, kind: input, shape index: {}]
  %s1 = inlined_call_operand.vmem [shape: f32[8,3], index: 1, kind: input, shape index: {}]
  %s2 = inlined_call_operand.vmem [shape: f32[8,3], index: 2, kind: input, shape index: {}]
  %s3 = inlined_call_operand.vmem [shape: bf16[32,256], index: 3, kind: input, shape index: {}]
  %s4 = inlined_call_operand.vmem [shape: f32[1,256], index: 4, kind: input, shape index: {}]
  %s5 = inlined_call_operand.hbm [shape: bf16[256,256], index: 5, kind: input, shape index: {}]
  %s6 = inlined_call_operand.vmem [shape: f32[1,256], index: 6, kind: input, shape index: {}]
  %s7 = inlined_call_operand.hbm [shape: bf16[256,256], index: 7, kind: input, shape index: {}]
  %s8 = inlined_call_operand.vmem [shape: f32[1,256], index: 8, kind: input, shape index: {}]
  %s9 = inlined_call_operand.hbm [shape: bf16[256,128], index: 9, kind: input, shape index: {}]
  %s10 = inlined_call_operand.vmem [shape: f32[1,128], index: 10, kind: input, shape index: {}]
  %s11 = inlined_call_operand.vmem [shape: f32[8,8], index: 11, kind: output, shape index: {}]
  %s12 = sld [smem:[#allocation0]]
  $region66: #{mobius_flow_forward.1} parent=0
    _
  %s14 = ssub.s32 1, %s12
  %s15 = scalar_select 0, %s14, %s12
  $region1: #{mobius_flow_forward.1} parent=0
    #allocation2 [shape = 'u8[131072]{0}', space=vmem, size = 0x20000, scoped, tag = 'input window, operand 5, single buffered']
    #allocation3 [shape = 's32[1]{0}', space=sflag, size = 0x4, scoped, tag = 'scoped memory for mobius_flow_forward.1']
    #allocation4 [shape = 'u8[131072]{0}', space=vmem, size = 0x20000, scoped, tag = 'input window, operand 7, single buffered']
    #allocation5 [shape = 's32[1]{0}', space=sflag, size = 0x4, scoped, tag = 'scoped memory for mobius_flow_forward.1']
    #allocation6 [shape = 'u8[65536]{0}', space=vmem, size = 0x10000, scoped, tag = 'input window, operand 9, single buffered']
    %16 = vsyncpa [#allocation3], 0
    %17 = vsyncpa [#allocation5], 0
    // Predicated region
    $region2: #{mobius_flow_forward.1} parent=1 // pred_check
      _
    $region3: #{mobius_flow_forward.1} parent=1 // pred_check_branch
      %19 = sbr.rel (0) target = $region5
    $region4: #{mobius_flow_forward.1} parent=1 // pred_region
      _
    $region5: #{mobius_flow_forward.1} parent=1 // pred_fallthru
      _
    // Predicated region
    $region6: #{mobius_flow_forward.1} parent=1 // pred_check
      _
    $region7: #{mobius_flow_forward.1} parent=1 // pred_check_branch
      %21 = sbr.rel (0) target = $region9
    $region8: #{mobius_flow_forward.1} parent=1 // pred_region
      _
    $region9: #{mobius_flow_forward.1} parent=1 // pred_fallthru
      _
    // Predicated region
    $region10: #{mobius_flow_forward.1} parent=1 // pred_check
      _
    $region11: #{mobius_flow_forward.1} parent=1 // pred_check_branch
      %23 = sbr.rel (0) target = $region13
    $region12: #{mobius_flow_forward.1} parent=1 // pred_region
      _
    $region13: #{mobius_flow_forward.1} parent=1 // pred_fallthru
      _
    // Predicated region
    $region14: #{mobius_flow_forward.1} parent=1 // pred_check
      _
    $region15: #{mobius_flow_forward.1} parent=1 // pred_check_branch
      %25 = sbr.rel (0) target = $region17
    $region16: #{mobius_flow_forward.1} parent=1 // pred_region
      _
    $region17: #{mobius_flow_forward.1} parent=1 // pred_fallthru
      _
    // Predicated region
    $region18: #{mobius_flow_forward.1} parent=1 // pred_check
      _
    $region19: #{mobius_flow_forward.1} parent=1 // pred_check_branch
      %27 = sbr.rel (0) target = $region21
    $region20: #{mobius_flow_forward.1} parent=1 // pred_region
      _
    $region21: #{mobius_flow_forward.1} parent=1 // pred_fallthru
      _
    // Predicated region
    $region22: #{mobius_flow_forward.1} parent=1 // pred_check
      _
    $region23: #{mobius_flow_forward.1} parent=1 // pred_check_branch
      %29 = sbr.rel (0) target = $region25
    $region24: #{mobius_flow_forward.1} parent=1 // pred_region
      %s31 = ssub.s32 4096, 4096
      %32 = vsyncadd [#allocation3], %s31
      %s33 = sshll.u32 [#allocation2], 4
      %s34 = int_to_ptr.vmem [resolvable:$true] %s33
      %39 = dma.hbm_to_vmem [thread:$0]  %s5, 4096, %s34, [#allocation3], 128, 128, 8
    $region25: #{mobius_flow_forward.1} parent=1 // pred_fallthru
      _
    // Predicated region
    $region26: #{mobius_flow_forward.1} parent=1 // pred_check
      _
    $region27: #{mobius_flow_forward.1} parent=1 // pred_check_branch
      %41 = sbr.rel (0) target = $region29
    $region28: #{mobius_flow_forward.1} parent=1 // pred_region
      _
    $region29: #{mobius_flow_forward.1} parent=1 // pred_fallthru
      _
    // Predicated region
    $region30: #{mobius_flow_forward.1} parent=1 // pred_check
      _
    $region31: #{mobius_flow_forward.1} parent=1 // pred_check_branch
      %43 = sbr.rel (0) target = $region33
    $region32: #{mobius_flow_forward.1} parent=1 // pred_region
      %s45 = ssub.s32 4096, 4096
      %46 = vsyncadd [#allocation5], %s45
      %s47 = sshll.u32 [#allocation4], 4
      %s48 = int_to_ptr.vmem [resolvable:$true] %s47
      %53 = dma.hbm_to_vmem [thread:$0]  %s7, 4096, %s48, [#allocation5], 128, 128, 8
    $region33: #{mobius_flow_forward.1} parent=1 // pred_fallthru
      _
    // Predicated region
    $region34: #{mobius_flow_forward.1} parent=1 // pred_check
      _
    $region35: #{mobius_flow_forward.1} parent=1 // pred_check_branch
      %55 = sbr.rel (0) target = $region37
    $region36: #{mobius_flow_forward.1} parent=1 // pred_region
      _
    $region37: #{mobius_flow_forward.1} parent=1 // pred_fallthru
      _
    // Predicated region
    $region38: #{mobius_flow_forward.1} parent=1 // pred_check
      _
    $region39: #{mobius_flow_forward.1} parent=1 // pred_check_branch
      %57 = sbr.rel (0) target = $region41
    $region40: #{mobius_flow_forward.1} parent=1 // pred_region
      %s59 = ssub.s32 2048, 2048
      %60 = vsyncadd [#allocation5], %s59
      %s61 = sshll.u32 [#allocation6], 4
      %s62 = int_to_ptr.vmem [resolvable:$true] %s61
      %67 = dma.hbm_to_vmem [thread:$0]  %s9, 2048, %s62, [#allocation5], 64, 64, 4
    $region41: #{mobius_flow_forward.1} parent=1 // pred_fallthru
      _
    // Predicated region
    $region42: #{mobius_flow_forward.1} parent=1 // pred_check
      _
    $region43: #{mobius_flow_forward.1} parent=1 // pred_check_branch
      %69 = sbr.rel (0) target = $region45
    $region44: #{mobius_flow_forward.1} parent=1 // pred_region
      _
    $region45: #{mobius_flow_forward.1} parent=1 // pred_fallthru
      _
    // Predicated region
    $region46: #{mobius_flow_forward.1} parent=1 // pred_check
      _
    $region47: #{mobius_flow_forward.1} parent=1 // pred_check_branch
      %71 = sbr.rel (0) target = $region49
    $region48: #{mobius_flow_forward.1} parent=1 // pred_region
      %72 = dma.done [#allocation3], 4096
    $region49: #{mobius_flow_forward.1} parent=1 // pred_fallthru
      _
    // Predicated region
    $region50: #{mobius_flow_forward.1} parent=1 // pred_check
      _
    $region51: #{mobius_flow_forward.1} parent=1 // pred_check_branch
      %74 = sbr.rel (0) target = $region53
    $region52: #{mobius_flow_forward.1} parent=1 // pred_region
      %75 = dma.done [#allocation5], 4096
    $region53: #{mobius_flow_forward.1} parent=1 // pred_fallthru
      _
    // Predicated region
    $region54: #{mobius_flow_forward.1} parent=1 // pred_check
      _
    $region55: #{mobius_flow_forward.1} parent=1 // pred_check_branch
      %77 = sbr.rel (0) target = $region57
    $region56: #{mobius_flow_forward.1} parent=1 // pred_region
      %78 = dma.done [#allocation5], 2048
    $region57: #{mobius_flow_forward.1} parent=1 // pred_fallthru
      _
    %v80 = vld [vmem:[%s0] sm:$0xff]
    %v81 = vpack.c.bf16 %v80, %v80
    %v82 = vld [vmem:[%s3] sm:$0xff]
    %v83 = vld [vmem:[%s3 + $0x8] sm:$0xff]
    %v84 = vld [vmem:[%s3 + $0x10] sm:$0xff]
    %v85 = vld [vmem:[%s3 + $0x18] sm:$0xff]
    %v86 = vld [vmem:[%s4] sm:$0x3]
    %v88 = vlaneseq
    %v89 = vshrl.u32 %v88, 7
    %v90 = vsub.s32 0, %v89
    %v91 = vrot.slane %v86, %v90
    %v92 = vlaneseq
    %v93 = vshrl.u32 %v92, 7
    %v94 = vsub.s32 1, %v93
    %v95 = vrot.slane %v86, %v94
    %v102 = vunpack.c.l.b16 %v82
    %v103 = vunpack.c.h.b16 %v82
    %v104 = vunpack.c.l.b16 %v83
    %v105 = vunpack.c.h.b16 %v83
    %v106 = vunpack.c.l.b16 %v84
    %v107 = vunpack.c.h.b16 %v84
    %v108 = vunpack.c.l.b16 %v85
    %v109 = vunpack.c.h.b16 %v85
    %v110 = vpack.c.b16 %v104, %v102
    %v111 = vpack.c.b16 %v105, %v103
    %v112 = vpack.c.b16 %v108, %v106
    %v113 = vpack.c.b16 %v109, %v107
    %vm118 = vcmask 261120
    %v120 = vsel %vm118, %v81, 0
    %122 = vmatprep.subr.bf16.mxu0 %v111
    %123 = vmatpush1.bf16.msra.mxu0 %v110
    %124 = vmatprep.subr.bf16.mxu0 %v113
    %125 = vmatpush1.bf16.msra.mxu0 %v112
    %126 = vmatprep.subr.bf16.mxu0 0
    %127 = vmatpush1.bf16.msra.mxu0 0
    %128 = vmatprep.subr.bf16.mxu0 0
    %129 = vmatpush1.bf16.msra.mxu0 0
    %130 = vmatprep.subr.bf16.mxu0 0
    %131 = vmatpush1.bf16.msra.mxu0 0
    %132 = vmatprep.subr.bf16.mxu0 0
    %133 = vmatpush1.bf16.msra.mxu0 0
    %134 = vmatprep.subr.bf16.mxu0 0
    %135 = vmatpush1.bf16.msra.mxu0 0
    %136 = vmatprep.subr.bf16.mxu0 0
    %137 = vmatpush1.bf16.msra.mxu0 0
    %138 = vmatprep.subr.bf16.mxu0 0
    %139 = vmatpush1.bf16.msra.mxu0 0
    %140 = vmatprep.subr.bf16.mxu0 0
    %141 = vmatpush1.bf16.msra.mxu0 0
    %142 = vmatprep.subr.bf16.mxu0 0
    %143 = vmatpush1.bf16.msra.mxu0 0
    %144 = vmatprep.subr.bf16.mxu0 0
    %145 = vmatpush1.bf16.msra.mxu0 0
    %146 = vmatprep.subr.bf16.mxu0 0
    %147 = vmatpush1.bf16.msra.mxu0 0
    %148 = vmatprep.subr.bf16.mxu0 0
    %149 = vmatpush1.bf16.msra.mxu0 0
    %150 = vmatprep.subr.bf16.mxu0 0
    %151 = vmatpush1.bf16.msra.mxu0 0
    %152 = vmatprep.subr.bf16.mxu0 0
    %153 = vmatpush1.bf16.msra.mxu0 0
    %154 = vmatprep.mubr.bf16.mxu0 0
    %155 = vmatmul.mubr.bf16.gmra.mrb[0].mxu0 %v120
    %v156 = vpop.f32.mrb[0].mxu0
    %v157 = vadd.f32 %v91, %v156
    %v158 = vpop.f32.mrb[0].mxu0
    %v159 = vadd.f32 %v95, %v158
    %v160 = vpop.f32.mrb[0].mxu0
    %v161 = vpop.f32.mrb[0].mxu0
    %162 = vdwg.mxu0
    %v163 = vpack.c.bf16 %v157, %v157
    %v164 = vpack.c.bf16 %v159, %v159
    %v165 = vld [vmem:[#allocation2] sm:$0xff]
    %v166 = vld [vmem:[#allocation2 + $0x8] sm:$0xff]
    %v167 = vld [vmem:[#allocation2 + $0x10] sm:$0xff]
    %v168 = vld [vmem:[#allocation2 + $0x18] sm:$0xff]
    %v169 = vld [vmem:[#allocation2 + $0x20] sm:$0xff]
    %v170 = vld [vmem:[#allocation2 + $0x28] sm:$0xff]
    %v171 = vld [vmem:[#allocation2 + $0x30] sm:$0xff]
    %v172 = vld [vmem:[#allocation2 + $0x38] sm:$0xff]
    %v173 = vld [vmem:[#allocation2 + $0x40] sm:$0xff]
    %v174 = vld [vmem:[#allocation2 + $0x48] sm:$0xff]
    %v175 = vld [vmem:[#allocation2 + $0x50] sm:$0xff]
    %v176 = vld [vmem:[#allocation2 + $0x58] sm:$0xff]
    %v177 = vld [vmem:[#allocation2 + $0x60] sm:$0xff]
    %v178 = vld [vmem:[#allocation2 + $0x68] sm:$0xff]
    %v179 = vld [vmem:[#allocation2 + $0x70] sm:$0xff]
    %v180 = vld [vmem:[#allocation2 + $0x78] sm:$0xff]
    %v181 = vld [vmem:[#allocation2 + $0x80] sm:$0xff]
    %v182 = vld [vmem:[#allocation2 + $0x88] sm:$0xff]
    %v183 = vld [vmem:[#allocation2 + $0x90] sm:$0xff]
    %v184 = vld [vmem:[#allocation2 + $0x98] sm:$0xff]
    %v185 = vld [vmem:[#allocation2 + $0xa0] sm:$0xff]
    %v186 = vld [vmem:[#allocation2 + $0xa8] sm:$0xff]
    %v187 = vld [vmem:[#allocation2 + $0xb0] sm:$0xff]
    %v188 = vld [vmem:[#allocation2 + $0xb8] sm:$0xff]
    %v189 = vld [vmem:[#allocation2 + $0xc0] sm:$0xff]
    %v190 = vld [vmem:[#allocation2 + $0xc8] sm:$0xff]
    %v191 = vld [vmem:[#allocation2 + $0xd0] sm:$0xff]
    %v192 = vld [vmem:[#allocation2 + $0xd8] sm:$0xff]
    %v193 = vld [vmem:[#allocation2 + $0xe0] sm:$0xff]
    %v194 = vld [vmem:[#allocation2 + $0xe8] sm:$0xff]
    %v195 = vld [vmem:[#allocation2 + $0xf0] sm:$0xff]
    %v196 = vld [vmem:[#allocation2 + $0xf8] sm:$0xff]
    %v197 = vld [vmem:[%s6] sm:$0x3]
    %v199 = vlaneseq
    %v200 = vshrl.u32 %v199, 7
    %v201 = vsub.s32 0, %v200
    %v202 = vrot.slane %v197, %v201
    %v203 = vlaneseq
    %v204 = vshrl.u32 %v203, 7
    %v205 = vsub.s32 1, %v204
    %v206 = vrot.slane %v197, %v205
    %v241 = vunpack.c.l.b16 %v165
    %v242 = vunpack.c.h.b16 %v165
    %v243 = vunpack.c.l.b16 %v166
    %v244 = vunpack.c.h.b16 %v166
    %v245 = vunpack.c.l.b16 %v167
    %v246 = vunpack.c.h.b16 %v167
    %v247 = vunpack.c.l.b16 %v168
    %v248 = vunpack.c.h.b16 %v168
    %v249 = vunpack.c.l.b16 %v169
    %v250 = vunpack.c.h.b16 %v169
    %v251 = vunpack.c.l.b16 %v170
    %v252 = vunpack.c.h.b16 %v170
    %v253 = vunpack.c.l.b16 %v171
    %v254 = vunpack.c.h.b16 %v171
    %v255 = vunpack.c.l.b16 %v172
    %v256 = vunpack.c.h.b16 %v172
    %v257 = vunpack.c.l.b16 %v173
    %v258 = vunpack.c.h.b16 %v173
    %v259 = vunpack.c.l.b16 %v174
    %v260 = vunpack.c.h.b16 %v174
    %v261 = vunpack.c.l.b16 %v175
    %v262 = vunpack.c.h.b16 %v175
    %v263 = vunpack.c.l.b16 %v176
    %v264 = vunpack.c.h.b16 %v176
    %v265 = vunpack.c.l.b16 %v177
    %v266 = vunpack.c.h.b16 %v177
    %v267 = vunpack.c.l.b16 %v178
    %v268 = vunpack.c.h.b16 %v178
    %v269 = vunpack.c.l.b16 %v179
    %v270 = vunpack.c.h.b16 %v179
    %v271 = vunpack.c.l.b16 %v180
    %v272 = vunpack.c.h.b16 %v180
    %v273 = vunpack.c.l.b16 %v181
    %v274 = vunpack.c.h.b16 %v181
    %v275 = vunpack.c.l.b16 %v182
    %v276 = vunpack.c.h.b16 %v182
    %v277 = vunpack.c.l.b16 %v183
    %v278 = vunpack.c.h.b16 %v183
    %v279 = vunpack.c.l.b16 %v184
    %v280 = vunpack.c.h.b16 %v184
    %v281 = vunpack.c.l.b16 %v185
    %v282 = vunpack.c.h.b16 %v185
    %v283 = vunpack.c.l.b16 %v186
    %v284 = vunpack.c.h.b16 %v186
    %v285 = vunpack.c.l.b16 %v187
    %v286 = vunpack.c.h.b16 %v187
    %v287 = vunpack.c.l.b16 %v188
    %v288 = vunpack.c.h.b16 %v188
    %v289 = vunpack.c.l.b16 %v189
    %v290 = vunpack.c.h.b16 %v189
    %v291 = vunpack.c.l.b16 %v190
    %v292 = vunpack.c.h.b16 %v190
    %v293 = vunpack.c.l.b16 %v191
    %v294 = vunpack.c.h.b16 %v191
    %v295 = vunpack.c.l.b16 %v192
    %v296 = vunpack.c.h.b16 %v192
    %v297 = vunpack.c.l.b16 %v193
    %v298 = vunpack.c.h.b16 %v193
    %v299 = vunpack.c.l.b16 %v194
    %v300 = vunpack.c.h.b16 %v194
    %v301 = vunpack.c.l.b16 %v195
    %v302 = vunpack.c.h.b16 %v195
    %v303 = vunpack.c.l.b16 %v196
    %v304 = vunpack.c.h.b16 %v196
    %v305 = vpack.c.b16 %v243, %v241
    %v306 = vpack.c.b16 %v244, %v242
    %v307 = vpack.c.b16 %v247, %v245
    %v308 = vpack.c.b16 %v248, %v246
    %v309 = vpack.c.b16 %v251, %v249
    %v310 = vpack.c.b16 %v252, %v250
    %v311 = vpack.c.b16 %v255, %v253
    %v312 = vpack.c.b16 %v256, %v254
    %v313 = vpack.c.b16 %v259, %v257
    %v314 = vpack.c.b16 %v260, %v258
    %v315 = vpack.c.b16 %v263, %v261
    %v316 = vpack.c.b16 %v264, %v262
    %v317 = vpack.c.b16 %v267, %v265
    %v318 = vpack.c.b16 %v268, %v266
    %v319 = vpack.c.b16 %v271, %v269
    %v320 = vpack.c.b16 %v272, %v270
    %v321 = vpack.c.b16 %v275, %v273
    %v322 = vpack.c.b16 %v276, %v274
    %v323 = vpack.c.b16 %v279, %v277
    %v324 = vpack.c.b16 %v280, %v278
    %v325 = vpack.c.b16 %v283, %v281
    %v326 = vpack.c.b16 %v284, %v282
    %v327 = vpack.c.b16 %v287, %v285
    %v328 = vpack.c.b16 %v288, %v286
    %v329 = vpack.c.b16 %v291, %v289
    %v330 = vpack.c.b16 %v292, %v290
    %v331 = vpack.c.b16 %v295, %v293
    %v332 = vpack.c.b16 %v296, %v294
    %v333 = vpack.c.b16 %v299, %v297
    %v334 = vpack.c.b16 %v300, %v298
    %v335 = vpack.c.b16 %v303, %v301
    %v336 = vpack.c.b16 %v304, %v302
    %369 = vmatprep.subr.bf16.mxu0 %v306
    %370 = vmatpush1.bf16.msra.mxu0 %v305
    %371 = vmatprep.subr.bf16.mxu0 %v308
    %372 = vmatpush1.bf16.msra.mxu0 %v307
    %373 = vmatprep.subr.bf16.mxu0 %v310
    %374 = vmatpush1.bf16.msra.mxu0 %v309
    %375 = vmatprep.subr.bf16.mxu0 %v312
    %376 = vmatpush1.bf16.msra.mxu0 %v311
    %377 = vmatprep.subr.bf16.mxu0 %v314
    %378 = vmatpush1.bf16.msra.mxu0 %v313
    %379 = vmatprep.subr.bf16.mxu0 %v316
    %380 = vmatpush1.bf16.msra.mxu0 %v315
    %381 = vmatprep.subr.bf16.mxu0 %v318
    %382 = vmatpush1.bf16.msra.mxu0 %v317
    %383 = vmatprep.subr.bf16.mxu0 %v320
    %384 = vmatpush1.bf16.msra.mxu0 %v319
    %385 = vmatprep.subr.bf16.mxu0 %v322
    %386 = vmatpush1.bf16.msra.mxu0 %v321
    %387 = vmatprep.subr.bf16.mxu0 %v324
    %388 = vmatpush1.bf16.msra.mxu0 %v323
    %389 = vmatprep.subr.bf16.mxu0 %v326
    %390 = vmatpush1.bf16.msra.mxu0 %v325
    %391 = vmatprep.subr.bf16.mxu0 %v328
    %392 = vmatpush1.bf16.msra.mxu0 %v327
    %393 = vmatprep.subr.bf16.mxu0 %v330
    %394 = vmatpush1.bf16.msra.mxu0 %v329
    %395 = vmatprep.subr.bf16.mxu0 %v332
    %396 = vmatpush1.bf16.msra.mxu0 %v331
    %397 = vmatprep.subr.bf16.mxu0 %v334
    %398 = vmatpush1.bf16.msra.mxu0 %v333
    %399 = vmatprep.subr.bf16.mxu0 %v336
    %400 = vmatpush1.bf16.msra.mxu0 %v335
    %401 = vmatprep.mubr.bf16.mxu0 %v164
    %402 = vmatmul.mubr.bf16.gmra.mrb[0].mxu0 %v163
    %v403 = vpop.f32.mrb[0].mxu0
    %v404 = vadd.f32 %v202, %v403
    %v405 = vpop.f32.mrb[0].mxu0
    %v406 = vadd.f32 %v206, %v405
    %v407 = vpop.f32.mrb[0].mxu0
    %v408 = vpop.f32.mrb[0].mxu0
    %409 = vdwg.mxu0
    %v410 = vmax.f32 %v404, 0.0
    %v411 = vmax.f32 %v406, 0.0
    %v412 = vadd.f32 %v157, %v410
    %v413 = vadd.f32 %v159, %v411
    %v414 = vpack.c.bf16 %v412, %v412
    %v415 = vpack.c.bf16 %v413, %v413
    %v416 = vld [vmem:[#allocation4] sm:$0xff]
    %v417 = vld [vmem:[#allocation4 + $0x8] sm:$0xff]
    %v418 = vld [vmem:[#allocation4 + $0x10] sm:$0xff]
    %v419 = vld [vmem:[#allocation4 + $0x18] sm:$0xff]
    %v420 = vld [vmem:[#allocation4 + $0x20] sm:$0xff]
    %v421 = vld [vmem:[#allocation4 + $0x28] sm:$0xff]
    %v422 = vld [vmem:[#allocation4 + $0x30] sm:$0xff]
    %v423 = vld [vmem:[#allocation4 + $0x38] sm:$0xff]
    %v424 = vld [vmem:[#allocation4 + $0x40] sm:$0xff]
    %v425 = vld [vmem:[#allocation4 + $0x48] sm:$0xff]
    %v426 = vld [vmem:[#allocation4 + $0x50] sm:$0xff]
    %v427 = vld [vmem:[#allocation4 + $0x58] sm:$0xff]
    %v428 = vld [vmem:[#allocation4 + $0x60] sm:$0xff]
    %v429 = vld [vmem:[#allocation4 + $0x68] sm:$0xff]
    %v430 = vld [vmem:[#allocation4 + $0x70] sm:$0xff]
    %v431 = vld [vmem:[#allocation4 + $0x78] sm:$0xff]
    %v432 = vld [vmem:[#allocation4 + $0x80] sm:$0xff]
    %v433 = vld [vmem:[#allocation4 + $0x88] sm:$0xff]
    %v434 = vld [vmem:[#allocation4 + $0x90] sm:$0xff]
    %v435 = vld [vmem:[#allocation4 + $0x98] sm:$0xff]
    %v436 = vld [vmem:[#allocation4 + $0xa0] sm:$0xff]
    %v437 = vld [vmem:[#allocation4 + $0xa8] sm:$0xff]
    %v438 = vld [vmem:[#allocation4 + $0xb0] sm:$0xff]
    %v439 = vld [vmem:[#allocation4 + $0xb8] sm:$0xff]
    %v440 = vld [vmem:[#allocation4 + $0xc0] sm:$0xff]
    %v441 = vld [vmem:[#allocation4 + $0xc8] sm:$0xff]
    %v442 = vld [vmem:[#allocation4 + $0xd0] sm:$0xff]
    %v443 = vld [vmem:[#allocation4 + $0xd8] sm:$0xff]
    %v444 = vld [vmem:[#allocation4 + $0xe0] sm:$0xff]
    %v445 = vld [vmem:[#allocation4 + $0xe8] sm:$0xff]
    %v446 = vld [vmem:[#allocation4 + $0xf0] sm:$0xff]
    %v447 = vld [vmem:[#allocation4 + $0xf8] sm:$0xff]
    %v448 = vld [vmem:[%s8] sm:$0x3]
    %v450 = vlaneseq
    %v451 = vshrl.u32 %v450, 7
    %v452 = vsub.s32 0, %v451
    %v453 = vrot.slane %v448, %v452
    %v454 = vlaneseq
    %v455 = vshrl.u32 %v454, 7
    %v456 = vsub.s32 1, %v455
    %v457 = vrot.slane %v448, %v456
    %v492 = vunpack.c.l.b16 %v416
    %v493 = vunpack.c.h.b16 %v416
    %v494 = vunpack.c.l.b16 %v417
    %v495 = vunpack.c.h.b16 %v417
    %v496 = vunpack.c.l.b16 %v418
    %v497 = vunpack.c.h.b16 %v418
    %v498 = vunpack.c.l.b16 %v419
    %v499 = vunpack.c.h.b16 %v419
    %v500 = vunpack.c.l.b16 %v420
    %v501 = vunpack.c.h.b16 %v420
    %v502 = vunpack.c.l.b16 %v421
    %v503 = vunpack.c.h.b16 %v421
    %v504 = vunpack.c.l.b16 %v422
    %v505 = vunpack.c.h.b16 %v422
    %v506 = vunpack.c.l.b16 %v423
    %v507 = vunpack.c.h.b16 %v423
    %v508 = vunpack.c.l.b16 %v424
    %v509 = vunpack.c.h.b16 %v424
    %v510 = vunpack.c.l.b16 %v425
    %v511 = vunpack.c.h.b16 %v425
    %v512 = vunpack.c.l.b16 %v426
    %v513 = vunpack.c.h.b16 %v426
    %v514 = vunpack.c.l.b16 %v427
    %v515 = vunpack.c.h.b16 %v427
    %v516 = vunpack.c.l.b16 %v428
    %v517 = vunpack.c.h.b16 %v428
    %v518 = vunpack.c.l.b16 %v429
    %v519 = vunpack.c.h.b16 %v429
    %v520 = vunpack.c.l.b16 %v430
    %v521 = vunpack.c.h.b16 %v430
    %v522 = vunpack.c.l.b16 %v431
    %v523 = vunpack.c.h.b16 %v431
    %v524 = vunpack.c.l.b16 %v432
    %v525 = vunpack.c.h.b16 %v432
    %v526 = vunpack.c.l.b16 %v433
    %v527 = vunpack.c.h.b16 %v433
    %v528 = vunpack.c.l.b16 %v434
    %v529 = vunpack.c.h.b16 %v434
    %v530 = vunpack.c.l.b16 %v435
    %v531 = vunpack.c.h.b16 %v435
    %v532 = vunpack.c.l.b16 %v436
    %v533 = vunpack.c.h.b16 %v436
    %v534 = vunpack.c.l.b16 %v437
    %v535 = vunpack.c.h.b16 %v437
    %v536 = vunpack.c.l.b16 %v438
    %v537 = vunpack.c.h.b16 %v438
    %v538 = vunpack.c.l.b16 %v439
    %v539 = vunpack.c.h.b16 %v439
    %v540 = vunpack.c.l.b16 %v440
    %v541 = vunpack.c.h.b16 %v440
    %v542 = vunpack.c.l.b16 %v441
    %v543 = vunpack.c.h.b16 %v441
    %v544 = vunpack.c.l.b16 %v442
    %v545 = vunpack.c.h.b16 %v442
    %v546 = vunpack.c.l.b16 %v443
    %v547 = vunpack.c.h.b16 %v443
    %v548 = vunpack.c.l.b16 %v444
    %v549 = vunpack.c.h.b16 %v444
    %v550 = vunpack.c.l.b16 %v445
    %v551 = vunpack.c.h.b16 %v445
    %v552 = vunpack.c.l.b16 %v446
    %v553 = vunpack.c.h.b16 %v446
    %v554 = vunpack.c.l.b16 %v447
    %v555 = vunpack.c.h.b16 %v447
    %v556 = vpack.c.b16 %v494, %v492
    %v557 = vpack.c.b16 %v495, %v493
    %v558 = vpack.c.b16 %v498, %v496
    %v559 = vpack.c.b16 %v499, %v497
    %v560 = vpack.c.b16 %v502, %v500
    %v561 = vpack.c.b16 %v503, %v501
    %v562 = vpack.c.b16 %v506, %v504
    %v563 = vpack.c.b16 %v507, %v505
    %v564 = vpack.c.b16 %v510, %v508
    %v565 = vpack.c.b16 %v511, %v509
    %v566 = vpack.c.b16 %v514, %v512
    %v567 = vpack.c.b16 %v515, %v513
    %v568 = vpack.c.b16 %v518, %v516
    %v569 = vpack.c.b16 %v519, %v517
    %v570 = vpack.c.b16 %v522, %v520
    %v571 = vpack.c.b16 %v523, %v521
    %v572 = vpack.c.b16 %v526, %v524
    %v573 = vpack.c.b16 %v527, %v525
    %v574 = vpack.c.b16 %v530, %v528
    %v575 = vpack.c.b16 %v531, %v529
    %v576 = vpack.c.b16 %v534, %v532
    %v577 = vpack.c.b16 %v535, %v533
    %v578 = vpack.c.b16 %v538, %v536
    %v579 = vpack.c.b16 %v539, %v537
    %v580 = vpack.c.b16 %v542, %v540
    %v581 = vpack.c.b16 %v543, %v541
    %v582 = vpack.c.b16 %v546, %v544
    %v583 = vpack.c.b16 %v547, %v545
    %v584 = vpack.c.b16 %v550, %v548
    %v585 = vpack.c.b16 %v551, %v549
    %v586 = vpack.c.b16 %v554, %v552
    %v587 = vpack.c.b16 %v555, %v553
    %620 = vmatprep.subr.bf16.mxu0 %v557
    %621 = vmatpush1.bf16.msra.mxu0 %v556
    %622 = vmatprep.subr.bf16.mxu0 %v559
    %623 = vmatpush1.bf16.msra.mxu0 %v558
    %624 = vmatprep.subr.bf16.mxu0 %v561
    %625 = vmatpush1.bf16.msra.mxu0 %v560
    %626 = vmatprep.subr.bf16.mxu0 %v563
    %627 = vmatpush1.bf16.msra.mxu0 %v562
    %628 = vmatprep.subr.bf16.mxu0 %v565
    %629 = vmatpush1.bf16.msra.mxu0 %v564
    %630 = vmatprep.subr.bf16.mxu0 %v567
    %631 = vmatpush1.bf16.msra.mxu0 %v566
    %632 = vmatprep.subr.bf16.mxu0 %v569
    %633 = vmatpush1.bf16.msra.mxu0 %v568
    %634 = vmatprep.subr.bf16.mxu0 %v571
    %635 = vmatpush1.bf16.msra.mxu0 %v570
    %636 = vmatprep.subr.bf16.mxu0 %v573
    %637 = vmatpush1.bf16.msra.mxu0 %v572
    %638 = vmatprep.subr.bf16.mxu0 %v575
    %639 = vmatpush1.bf16.msra.mxu0 %v574
    %640 = vmatprep.subr.bf16.mxu0 %v577
    %641 = vmatpush1.bf16.msra.mxu0 %v576
    %642 = vmatprep.subr.bf16.mxu0 %v579
    %643 = vmatpush1.bf16.msra.mxu0 %v578
    %644 = vmatprep.subr.bf16.mxu0 %v581
    %645 = vmatpush1.bf16.msra.mxu0 %v580
    %646 = vmatprep.subr.bf16.mxu0 %v583
    %647 = vmatpush1.bf16.msra.mxu0 %v582
    %648 = vmatprep.subr.bf16.mxu0 %v585
    %649 = vmatpush1.bf16.msra.mxu0 %v584
    %650 = vmatprep.subr.bf16.mxu0 %v587
    %651 = vmatpush1.bf16.msra.mxu0 %v586
    %652 = vmatprep.mubr.bf16.mxu0 %v415
    %653 = vmatmul.mubr.bf16.gmra.mrb[0].mxu0 %v414
    %v654 = vpop.f32.mrb[0].mxu0
    %v655 = vadd.f32 %v453, %v654
    %v656 = vpop.f32.mrb[0].mxu0
    %v657 = vadd.f32 %v457, %v656
    %v658 = vpop.f32.mrb[0].mxu0
    %v659 = vpop.f32.mrb[0].mxu0
    %660 = vdwg.mxu0
    %v661 = vmax.f32 %v655, 0.0
    %v662 = vmax.f32 %v657, 0.0
    %v663 = vadd.f32 %v412, %v661
    %v664 = vadd.f32 %v413, %v662
    %v665 = vpack.c.bf16 %v663, %v663
    %v666 = vpack.c.bf16 %v664, %v664
    %v667 = vld [vmem:[#allocation6] sm:$0xf]
    %v668 = vld [vmem:[#allocation6 + $0x4] sm:$0xf]
    %v669 = vld [vmem:[#allocation6 + $0x8] sm:$0xf]
    %v670 = vld [vmem:[#allocation6 + $0xc] sm:$0xf]
    %v671 = vld [vmem:[#allocation6 + $0x10] sm:$0xf]
    %v672 = vld [vmem:[#allocation6 + $0x14] sm:$0xf]
    %v673 = vld [vmem:[#allocation6 + $0x18] sm:$0xf]
    %v674 = vld [vmem:[#allocation6 + $0x1c] sm:$0xf]
    %v675 = vld [vmem:[#allocation6 + $0x20] sm:$0xf]
    %v676 = vld [vmem:[#allocation6 + $0x24] sm:$0xf]
    %v677 = vld [vmem:[#allocation6 + $0x28] sm:$0xf]
    %v678 = vld [vmem:[#allocation6 + $0x2c] sm:$0xf]
    %v679 = vld [vmem:[#allocation6 + $0x30] sm:$0xf]
    %v680 = vld [vmem:[#allocation6 + $0x34] sm:$0xf]
    %v681 = vld [vmem:[#allocation6 + $0x38] sm:$0xf]
    %v682 = vld [vmem:[#allocation6 + $0x3c] sm:$0xf]
    %v683 = vld [vmem:[#allocation6 + $0x40] sm:$0xf]
    %v684 = vld [vmem:[#allocation6 + $0x44] sm:$0xf]
    %v685 = vld [vmem:[#allocation6 + $0x48] sm:$0xf]
    %v686 = vld [vmem:[#allocation6 + $0x4c] sm:$0xf]
    %v687 = vld [vmem:[#allocation6 + $0x50] sm:$0xf]
    %v688 = vld [vmem:[#allocation6 + $0x54] sm:$0xf]
    %v689 = vld [vmem:[#allocation6 + $0x58] sm:$0xf]
    %v690 = vld [vmem:[#allocation6 + $0x5c] sm:$0xf]
    %v691 = vld [vmem:[#allocation6 + $0x60] sm:$0xf]
    %v692 = vld [vmem:[#allocation6 + $0x64] sm:$0xf]
    %v693 = vld [vmem:[#allocation6 + $0x68] sm:$0xf]
    %v694 = vld [vmem:[#allocation6 + $0x6c] sm:$0xf]
    %v695 = vld [vmem:[#allocation6 + $0x70] sm:$0xf]
    %v696 = vld [vmem:[#allocation6 + $0x74] sm:$0xf]
    %v697 = vld [vmem:[#allocation6 + $0x78] sm:$0xf]
    %v698 = vld [vmem:[#allocation6 + $0x7c] sm:$0xf]
    %v699 = vld [vmem:[%s10] sm:$0x1]
    %v701 = vlaneseq
    %v702 = vshrl.u32 %v701, 7
    %v703 = vsub.s32 0, %v702
    %v704 = vrot.slane %v699, %v703
    %v738 = vunpack.c.l.b16 %v667
    %v739 = vunpack.c.l.b16 %v668
    %v740 = vunpack.c.l.b16 %v669
    %v741 = vunpack.c.l.b16 %v670
    %v742 = vunpack.c.l.b16 %v671
    %v743 = vunpack.c.l.b16 %v672
    %v744 = vunpack.c.l.b16 %v673
    %v745 = vunpack.c.l.b16 %v674
    %v746 = vunpack.c.l.b16 %v675
    %v747 = vunpack.c.l.b16 %v676
    %v748 = vunpack.c.l.b16 %v677
    %v749 = vunpack.c.l.b16 %v678
    %v750 = vunpack.c.l.b16 %v679
    %v751 = vunpack.c.l.b16 %v680
    %v752 = vunpack.c.l.b16 %v681
    %v753 = vunpack.c.l.b16 %v682
    %v754 = vunpack.c.l.b16 %v683
    %v755 = vunpack.c.l.b16 %v684
    %v756 = vunpack.c.l.b16 %v685
    %v757 = vunpack.c.l.b16 %v686
    %v758 = vunpack.c.l.b16 %v687
    %v759 = vunpack.c.l.b16 %v688
    %v760 = vunpack.c.l.b16 %v689
    %v761 = vunpack.c.l.b16 %v690
    %v762 = vunpack.c.l.b16 %v691
    %v763 = vunpack.c.l.b16 %v692
    %v764 = vunpack.c.l.b16 %v693
    %v765 = vunpack.c.l.b16 %v694
    %v766 = vunpack.c.l.b16 %v695
    %v767 = vunpack.c.l.b16 %v696
    %v768 = vunpack.c.l.b16 %v697
    %v769 = vunpack.c.l.b16 %v698
    %v770 = vpack.c.b16 %v739, %v738
    %v771 = vpack.c.b16 %v741, %v740
    %v772 = vpack.c.b16 %v743, %v742
    %v773 = vpack.c.b16 %v745, %v744
    %v774 = vpack.c.b16 %v747, %v746
    %v775 = vpack.c.b16 %v749, %v748
    %v776 = vpack.c.b16 %v751, %v750
    %v777 = vpack.c.b16 %v753, %v752
    %v778 = vpack.c.b16 %v755, %v754
    %v779 = vpack.c.b16 %v757, %v756
    %v780 = vpack.c.b16 %v759, %v758
    %v781 = vpack.c.b16 %v761, %v760
    %v782 = vpack.c.b16 %v763, %v762
    %v783 = vpack.c.b16 %v765, %v764
    %v784 = vpack.c.b16 %v767, %v766
    %v785 = vpack.c.b16 %v769, %v768
    %802 = vmatprep.subr.bf16.mxu0 0
    %803 = vmatpush1.bf16.msra.mxu0 %v770
    %804 = vmatprep.subr.bf16.mxu0 0
    %805 = vmatpush1.bf16.msra.mxu0 %v771
    %806 = vmatprep.subr.bf16.mxu0 0
    %807 = vmatpush1.bf16.msra.mxu0 %v772
    %808 = vmatprep.subr.bf16.mxu0 0
    %809 = vmatpush1.bf16.msra.mxu0 %v773
    %810 = vmatprep.subr.bf16.mxu0 0
    %811 = vmatpush1.bf16.msra.mxu0 %v774
    %812 = vmatprep.subr.bf16.mxu0 0
    %813 = vmatpush1.bf16.msra.mxu0 %v775
    %814 = vmatprep.subr.bf16.mxu0 0
    %815 = vmatpush1.bf16.msra.mxu0 %v776
    %816 = vmatprep.subr.bf16.mxu0 0
    %817 = vmatpush1.bf16.msra.mxu0 %v777
    %818 = vmatprep.subr.bf16.mxu0 0
    %819 = vmatpush1.bf16.msra.mxu0 %v778
    %820 = vmatprep.subr.bf16.mxu0 0
    %821 = vmatpush1.bf16.msra.mxu0 %v779
    %822 = vmatprep.subr.bf16.mxu0 0
    %823 = vmatpush1.bf16.msra.mxu0 %v780
    %824 = vmatprep.subr.bf16.mxu0 0
    %825 = vmatpush1.bf16.msra.mxu0 %v781
    %826 = vmatprep.subr.bf16.mxu0 0
    %827 = vmatpush1.bf16.msra.mxu0 %v782
    %828 = vmatprep.subr.bf16.mxu0 0
    %829 = vmatpush1.bf16.msra.mxu0 %v783
    %830 = vmatprep.subr.bf16.mxu0 0
    %831 = vmatpush1.bf16.msra.mxu0 %v784
    %832 = vmatprep.subr.bf16.mxu0 0
    %833 = vmatpush1.bf16.msra.mxu0 %v785
    %834 = vmatprep.mubr.bf16.mxu0 %v666
    %835 = vmatmul.mubr.bf16.gmra.mrb[0].mxu0 %v665
    %v836 = vpop.f32.mrb[0].mxu0
    %v837 = vadd.f32 %v704, %v836
    %v838 = vpop.f32.mrb[0].mxu0
    %v839 = vpop.f32.mrb[0].mxu0
    %v840 = vpop.f32.mrb[0].mxu0
    %841 = vdwg.mxu0
    %v842 = vmax.f32 %v837, 0.0
    %v843 = vxor.u32 %v842, 2147483648
    %v844 = vmul.f32 %v843, 1.442695
    %v845 = vpow.pop %v844
    %v846 = vadd.f32 %v845, 1.0
    %v847 = vrcp.pop %v846
    %v848 = vmul.f32 1.0, %v847
    %v849 = vld [vmem:[%s1] sm:$0xff]
    %v850 = vld [vmem:[%s2] sm:$0xff]
    %852 = vrot.lane.b32.xlu0 %v842, 127
    %v853 = vpop.permute.xlu0 %852
    %v855 = vmul.f32 %v849, %v853
    %vm856 = vcmask 23552
    %v857 = vsel %vm856, %v855, 0.0
    %858 = vadd.xlane.f32.xlu0 %v857
    %v859 = vpop.xlane.xlu0 %858
    %v860 = vmul.f32 %v849, %v859
    %862 = vrot.lane.b32.xlu0 %v860, 1
    %v863 = vpop.permute.xlu0 %862
    %v865 = vsub.f32 %v842, %v863
    %v866 = vmul.f32 %v865, %v865
    %868 = vrot.lane.b32.xlu0 %v866, 127
    %v869 = vpop.permute.xlu0 %868
    %v871 = vsel %vm856, %v869, 0.0
    %872 = vadd.xlane.f32.xlu0 %v871
    %v873 = vpop.xlane.xlu0 %872
    %v874 = vrsqrt.pop %v873
    %v875 = vmul.f32 %v873, %v874
    %vm876 = vcmp.eq.f32.partialorder %v873, inf
    %v877 = vsel %vm876, %v873, %v875
    %vm878 = vcmp.eq.f32.partialorder %v873, 0.0
    %v879 = vand.u32 %v873, 2147483648
    %v880 = vsel %vm878, %v879, %v877
    %v881 = vadd.f32 %v880, 1e-08
    %v882 = vrcp.pop %v881
    %v883 = vmul.f32 %v882, 0.7
    %v884 = vmul.f32 %v883, %v865
    %886 = vset.pattern.permute.xlu0 0
    %887 = vperm.xlu0 %886, %v848
    %v888 = vpop.permute.xlu0 %887
    %v890 = vmul.f32 %v884, %v888
    %892 = vrot.lane.b32.xlu0 %v890, 127
    %v893 = vpop.permute.xlu0 %892
    %v895 = vsub.f32 %v850, %v893
    %v896 = vmul.f32 %v895, %v895
    %v897 = vsel %vm856, %v896, 0.0
    %898 = vadd.xlane.f32.xlu0 %v897
    %v899 = vpop.xlane.xlu0 %898
    %v900 = vmul.f32 %v890, %v890
    %902 = vrot.lane.b32.xlu0 %v900, 127
    %v903 = vpop.permute.xlu0 %902
    %v905 = vsel %vm856, %v903, 0.0
    %906 = vadd.xlane.f32.xlu0 %v905
    %v907 = vpop.xlane.xlu0 %906
    %v908 = vsub.f32 1.0, %v907
    %v909 = vrcp.pop %v899
    %v910 = vmul.f32 %v908, %v909
    %v911 = vmul.f32 %v910, %v895
    %v912 = vsub.f32 %v911, %v893
    %914 = vrot.lane.b32.xlu0 %v912, 127
    %v915 = vpop.permute.xlu0 %914
    %v917 = vmul.f32 %v849, %v915
    %918 = vrot.lane.b32.xlu0 %v912, 1
    %v919 = vpop.permute.xlu0 %918
    %v921 = vmul.f32 %v849, %v919
    %923 = vrot.lane.b32.xlu0 %v921, 127
    %v924 = vpop.permute.xlu0 %923
    %v926 = vsub.f32 %v917, %v924
    %927 = vrot.lane.b32.xlu0 %v912, 2
    %v928 = vpop.permute.xlu0 %927
    %v930 = vmul.f32 %v849, %v928
    %931 = vrot.lane.b32.xlu0 %v912, 126
    %v932 = vpop.permute.xlu0 %931
    %v934 = vmul.f32 %v849, %v932
    %936 = vrot.lane.b32.xlu0 %v934, 2
    %v937 = vpop.permute.xlu0 %936
    %v939 = vsub.f32 %v930, %v937
    %941 = vrot.lane.b32.xlu0 %v926, 2
    %v942 = vpop.permute.xlu0 %941
    %945 = vrot.lane.b32.xlu0 %v939, 2
    %v946 = vpop.permute.xlu0 %945
    %948 = vrot.lane.b32.xlu0 %v926, 5
    %v949 = vpop.permute.xlu0 %948
    %v951 = vsel %vm856, %v912, %v942
    %vm952 = vcmask 31744
    %v953 = vsel %vm952, %v951, %v946
    %vm954 = vcmask 39936
    %v955 = vsel %vm954, %v953, %v949
    %vm956 = vcmask 48128
    %v957 = vsel %vm956, %v955, 0.0
    %vm958 = vcmask 64512
    %959 = vst.msk [vmem:[%s11] sm:$0xff] %vm958, %v957
    // Predicated region
    $region58: #{mobius_flow_forward.1} parent=1 // pred_check
      _
    $region59: #{mobius_flow_forward.1} parent=1 // pred_check_branch
      %961 = sbr.rel (0) target = $region61
    $region60: #{mobius_flow_forward.1} parent=1 // pred_region
      _
    $region61: #{mobius_flow_forward.1} parent=1 // pred_fallthru
      _
    // Predicated region
    $region62: #{mobius_flow_forward.1} parent=1 // pred_check
      _
    $region63: #{mobius_flow_forward.1} parent=1 // pred_check_branch
      %963 = sbr.rel (0) target = $region65
    $region64: #{mobius_flow_forward.1} parent=1 // pred_region
      _
    $region65: #{mobius_flow_forward.1} parent=1 // pred_fallthru
      _
    %964 = vsyncpa [#allocation3], 1
    %965 = vsyncpa [#allocation5], 1

</llo_original>
